<compile_context>
chip_gen: v6e
topology: v6e:2x2x1
jax: 0.10.0
libtpu: 0.0.40
codegen_flags: <defaults>
</compile_context>

<pallas_src>
import jax
import jax.numpy as jnp
import numpy as np
from jax.experimental import pallas as pl
from jax.experimental.pallas import tpu as pltpu

_LANE = 128
_SUBLANE = 8
# Double-buffered per-grid-step working-set budget.  Conservative enough for the
# 16 MiB default scoped VMEM on v5e; trivially fine on v6e/v7x.
_VMEM_BUDGET_BYTES = 12 * 1024 * 1024
# Keep >= this many grid steps so v7x's 2 TensorCores both get work and the
# DMA/compute pipeline overlaps (near-zero cost on single-TC v5e/v6e).
_MIN_GRID_STEPS = 4


def _elu(x):
    # ELU, alpha=1 (F.elu default).  exp only sees the clamped argument so the
    # untaken branch cannot overflow.
    return jnp.where(x > 0, x, jnp.exp(jnp.minimum(x, 0.0)) - 1.0)


# ---- kernels -----------------------------------------------------------------

def _finalize_proj_kernel(accum_ref, h_ref, w_ref, out_ref):
    # out = elu(accum + h @ w_res)   (residual with projection; heads fused in cols)
    proj = jnp.dot(h_ref[...], w_ref[...], preferred_element_type=jnp.float32)
    x = accum_ref[...].astype(jnp.float32) + proj
    out_ref[...] = _elu(x).astype(out_ref.dtype)


def _finalize_add_kernel(accum_ref, h_ref, out_ref):
    # out = elu(accum + h)           (identity residual, indim == hidden)
    x = accum_ref[...].astype(jnp.float32) + h_ref[...].astype(jnp.float32)
    out_ref[...] = _elu(x).astype(out_ref.dtype)


def _finalize_plain_kernel(accum_ref, out_ref):
    # out = elu(accum)               (no residual)
    out_ref[...] = _elu(accum_ref[...].astype(jnp.float32)).astype(out_ref.dtype)


# ---- wrapper -----------------------------------------------------------------

def _round_up(x, m):
    return (x + m - 1) // m * m


def _pick_tile_rows(n_rows, bytes_per_row, tn_req):
    """Row-tile: as large as requested, but (a) double-buffered working set stays
    under the VMEM budget and (b) the grid keeps >= _MIN_GRID_STEPS steps."""
    cap_vmem = max(_SUBLANE,
                   (_VMEM_BUDGET_BYTES // (2 * max(1, bytes_per_row)))
                   // _SUBLANE * _SUBLANE)
    cap_grid = _round_up(pl.cdiv(n_rows, _MIN_GRID_STEPS), _SUBLANE)
    tn = max(_SUBLANE, _round_up(tn_req, _SUBLANE))
    return max(_SUBLANE, min(tn, cap_vmem, cap_grid))


def _elementwise_call(kernel, arrays, out_dtype, tn_req):
    """Shared path for the pure-elementwise variants (identity residual / none)."""
    orig_shape = arrays[0].shape
    n, c = orig_shape
    # Lane-densify: fold rows into the 128-wide lane axis when the element count
    # allows it (free metadata reshape on contiguous arrays; semantics unchanged
    # for elementwise ops).
    if c < _LANE and (n * c) % _LANE == 0:
        arrays = [a.reshape(-1, _LANE) for a in arrays]
        n, c = arrays[0].shape

    bytes_per_row = c * (sum(a.dtype.itemsize for a in arrays)
                         + np.dtype(out_dtype).itemsize)
    tn = _pick_tile_rows(n, bytes_per_row, tn_req)
    grid = (pl.cdiv(n, tn),)
    spec = pl.BlockSpec((tn, c), lambda i: (i, 0))

    out = pl.pallas_call(
        kernel,
        out_shape=jax.ShapeDtypeStruct((n, c), out_dtype),
        grid_spec=pltpu.PrefetchScalarGridSpec(
            num_scalar_prefetch=0,
            grid=grid,
            in_specs=[spec] * len(arrays),
            out_specs=spec,
        ),
        compiler_params=pltpu.CompilerParams(dimension_semantics=("parallel",)),
    )(*arrays)
    return out.reshape(orig_shape)


def gat_finalize(accum, h=None, w_res=None, *, residual=True, tn=2048,
                 out_dtype=None):
    """GATFinalize forward (all heads fused into one call).

    accum : (N, heads*hidden)  per-head aggregated attention outputs, stacked on
            the last axis ('accum' node field, one slab per head).
    h     : (N, indim)         original node features ('h'), needed iff residual.
    w_res : (indim, heads*hidden)  per-head residual_fc weights, pre-transposed
            (x @ W_i^T) and stacked on the last axis; needed iff residual and
            indim != hidden.
    Returns elu(residual_term + accum), shape (N, heads*hidden); slice columns
    per head to recover {'head%d': ...}.
    """
    n, hidden_total = accum.shape
    out_dtype = accum.dtype if out_dtype is None else out_dtype

    if residual and w_res is not None:
        indim = h.shape[1]
        assert h.shape[0] == n
        assert w_res.shape == (indim, hidden_total)

        bytes_per_row = (accum.dtype.itemsize * hidden_total
                         + h.dtype.itemsize * indim
                         + np.dtype(out_dtype).itemsize * hidden_total)
        tn_eff = _pick_tile_rows(n, bytes_per_row, tn)
        grid = (pl.cdiv(n, tn_eff),)

        return pl.pallas_call(
            _finalize_proj_kernel,
            out_shape=jax.ShapeDtypeStruct((n, hidden_total), out_dtype),
            grid_spec=pltpu.PrefetchScalarGridSpec(
                num_scalar_prefetch=0,
                grid=grid,
                in_specs=[
                    pl.BlockSpec((tn_eff, hidden_total), lambda i: (i, 0)),
                    pl.BlockSpec((tn_eff, indim), lambda i: (i, 0)),
                    # fused residual weight: constant block index -> resident.
                    pl.BlockSpec((indim, hidden_total), lambda i: (0, 0)),
                ],
                out_specs=pl.BlockSpec((tn_eff, hidden_total), lambda i: (i, 0)),
            ),
            compiler_params=pltpu.CompilerParams(
                dimension_semantics=("parallel",)),
        )(accum, h, w_res)

    if residual:
        assert h.shape == accum.shape, "identity residual requires indim == hidden"
        return _elementwise_call(_finalize_add_kernel, [accum, h], out_dtype, tn)

    return _elementwise_call(_finalize_plain_kernel, [accum], out_dtype, tn)


# ---- reference + demo --------------------------------------------------------

def _ref_finalize(accum, h, w_res, residual):
    ret = accum
    if residual:
        ret = (h @ w_res if w_res is not None else h) + ret
    return jax.nn.elu(ret)


def _xavier_normal(key, shape, gain):
    fan_out, fan_in = shape
    std = gain * np.sqrt(2.0 / (fan_in + fan_out))
    return jax.random.normal(key, shape, dtype=jnp.float32) * std


if __name__ == "__main__":
    heads, indim, hidden = 8, 64, 32
    N = 1000  # not a multiple of the tile -> exercises cdiv grid / boundary masking

    key = jax.random.PRNGKey(0)
    k_h, k_acc, k_w = jax.random.split(key, 3)

    h = jax.random.normal(k_h, (N, indim), dtype=jnp.float32)
    # Per-head accum slabs stacked on the last axis -> (N, heads*hidden), lane-dense.
    accum = jax.random.normal(k_acc, (N, heads * hidden), dtype=jnp.float32)
    # PyTorch residual_fc weight per head is (hidden, indim); pre-transpose & stack.
    w_keys = jax.random.split(k_w, heads)
    w_heads = [_xavier_normal(w_keys[i], (hidden, indim), gain=1.414).T
               for i in range(heads)]                       # each (indim, hidden)
    w_res = jnp.concatenate(w_heads, axis=1)                # (indim, heads*hidden)

    # Case 1: residual with projection, all heads fused (the main kernel).
    out = jax.block_until_ready(gat_finalize(accum, h, w_res, residual=True))
    ref = _ref_finalize(accum, h, w_res, residual=True)
    np.testing.assert_allclose(np.asarray(out), np.asarray(ref),
                               rtol=1e-5, atol=1e-5)
    heads_out = {"head%d" % i: out[:, i * hidden:(i + 1) * hidden]
                 for i in range(heads)}  # mirrors the module's per-head return dict

    # Case 2: identity residual (indim == hidden) -> lane-folded elementwise path.
    accum_sq = jax.random.normal(jax.random.PRNGKey(1), (N, hidden), jnp.float32)
    h_sq = jax.random.normal(jax.random.PRNGKey(2), (N, hidden), jnp.float32)
    out2 = jax.block_until_ready(gat_finalize(accum_sq, h_sq, None, residual=True))
    ref2 = _ref_finalize(accum_sq, h_sq, None, residual=True)
    np.testing.assert_allclose(np.asarray(out2), np.asarray(ref2),
                               rtol=1e-5, atol=1e-5)

    # Case 3: no residual.
    out3 = jax.block_until_ready(gat_finalize(accum_sq, residual=False))
    ref3 = _ref_finalize(accum_sq, None, None, residual=False)
    np.testing.assert_allclose(np.asarray(out3), np.asarray(ref3),
                               rtol=1e-5, atol=1e-5)

    print("KERNEL_OK")
</pallas_src>

<mosaic_0001>
module attributes {stable_mosaic.version = 11 : i64} {
  func.func @_finalize_proj_kernel(%arg0: i32, %arg1: memref<256x256xf32, #tpu.memory_space<vmem>>, %arg2: memref<256x64xf32, #tpu.memory_space<vmem>>, %arg3: memref<64x256xf32, #tpu.memory_space<vmem>>, %arg4: memref<256x256xf32, #tpu.memory_space<vmem>>) attributes {dimension_semantics = [#tpu.dimension_semantics<parallel>], iteration_bounds = array<i64: 4>, scalar_prefetch = 0 : i64, scratch_operands = 0 : i64, tpu.core_type = #tpu.core_type<tc>, window_params = [{transform_indices = @transform_0, window_bounds = array<i64: 256, 256>}, {transform_indices = @transform_1, window_bounds = array<i64: 256, 64>}, {pipeline_mode = #tpu.pipeline_mode<synchronous>, transform_indices = @transform_2, window_bounds = array<i64: 64, 256>}, {transform_indices = @transform_3, window_bounds = array<i64: 256, 256>}]} {
    %c0 = arith.constant 0 : index
    %c0_0 = arith.constant 0 : index
    %0 = vector.load %arg2[%c0, %c0_0] : memref<256x64xf32, #tpu.memory_space<vmem>>, vector<256x64xf32>
    %c0_1 = arith.constant 0 : index
    %c0_2 = arith.constant 0 : index
    %1 = vector.load %arg3[%c0_1, %c0_2] : memref<64x256xf32, #tpu.memory_space<vmem>>, vector<64x256xf32>
    %cst = arith.constant dense<0.000000e+00> : vector<256x256xf32>
    %2 = tpu.matmul %0, %1, %cst {dimension_numbers = #tpu.dot_dimension_numbers<[1], [0], [0], [1], [0, 0, 1, 1], [], []>} : vector<256x64xf32>, vector<64x256xf32>, vector<256x256xf32> -> vector<256x256xf32>
    %c0_3 = arith.constant 0 : index
    %c0_4 = arith.constant 0 : index
    %3 = vector.load %arg1[%c0_3, %c0_4] : memref<256x256xf32, #tpu.memory_space<vmem>>, vector<256x256xf32>
    %4 = arith.addf %3, %2 : vector<256x256xf32>
    %cst_5 = arith.constant 0.000000e+00 : f32
    %5 = vector.broadcast %cst_5 : f32 to vector<256x256xf32>
    %6 = arith.cmpf ogt, %4, %5 : vector<256x256xf32>
    %cst_6 = arith.constant 0.000000e+00 : f32
    %7 = vector.broadcast %cst_6 : f32 to vector<256x256xf32>
    %8 = arith.minimumf %4, %7 : vector<256x256xf32>
    %9 = math.exp %8 : vector<256x256xf32>
    %cst_7 = arith.constant 1.000000e+00 : f32
    %10 = vector.broadcast %cst_7 : f32 to vector<256x256xf32>
    %11 = arith.subf %9, %10 : vector<256x256xf32>
    %12 = arith.select %6, %4, %11 : vector<256x256xi1>, vector<256x256xf32>
    %c0_8 = arith.constant 0 : index
    %c0_9 = arith.constant 0 : index
    %13 = vector.load %arg4[%c0_8, %c0_9] : memref<256x256xf32, #tpu.memory_space<vmem>>, vector<256x256xf32>
    tpu.vector_store %arg4[%c0_8, %c0_9], %12 {strides = array<i32>} : memref<256x256xf32, #tpu.memory_space<vmem>>, vector<256x256xf32>,
    return
  }
  func.func @transform_0(%arg0: i32) -> (i32, i32) {
    %c0_i32 = arith.constant 0 : i32
    %c0_i32_0 = arith.constant 0 : i32
    return %arg0, %c0_i32 : i32, i32
  }
  func.func @transform_1(%arg0: i32) -> (i32, i32) {
    %c0_i32 = arith.constant 0 : i32
    %c0_i32_0 = arith.constant 0 : i32
    return %arg0, %c0_i32 : i32, i32
  }
  func.func @transform_2(%arg0: i32) -> (i32, i32) {
    %c0_i32 = arith.constant 0 : i32
    %c0_i32_0 = arith.constant 0 : i32
    %c0_i32_1 = arith.constant 0 : i32
    return %c0_i32, %c0_i32_0 : i32, i32
  }
  func.func @transform_3(%arg0: i32) -> (i32, i32) {
    %c0_i32 = arith.constant 0 : i32
    %c0_i32_0 = arith.constant 0 : i32
    return %arg0, %c0_i32 : i32, i32
  }
}

</mosaic_0001>

<llo_original>
// kernel: tpu_custom_call.1
$region0: #{tpu_custom_call.1}
  #allocation0 [shape = 'u32[]', space=smem, size = 0x4, offset = 0x4, fixed_abs, tag = 'smem constant byte address 0x4 - core index']
  #allocation1 [shape = 'u32[144,128]{1,0:T(1,128)}', space=vmem, size = 0x12000, scoped, tag = 'internal scratch']
  %s0 = inlined_call_operand.hbm [shape: f32[1000,256], index: 0, kind: input, shape index: {}]
  %s1 = inlined_call_operand.vmem [shape: f32[1000,64], index: 1, kind: input, shape index: {}]
  %s2 = inlined_call_operand.vmem [shape: f32[64,256], index: 2, kind: input, shape index: {}]
  %s3 = inlined_call_operand.hbm [shape: f32[1000,256], index: 3, kind: output, shape index: {}]
  %s4 = sld [smem:[#allocation0]]
  $region49: #{tpu_custom_call.1} parent=0
    _
  %s6 = ssub.s32 1, %s4
  %s7 = scalar_select 0, %s6, %s4
  $region1: #{tpu_custom_call.1} parent=0
    #allocation2 [shape = 'u8[524288]{0}', space=vmem, size = 0x80000, scoped, tag = 'input window, operand 0']
    #allocation3 [shape = 's32[2]{0}', space=sflag, size = 0x8, scoped, tag = 'scoped memory for tpu_custom_call.1']
    #allocation4 [shape = 's32[2]{0}', space=sflag, size = 0x8, scoped, tag = 'scoped memory for tpu_custom_call.1']
    #allocation5 [shape = 'u8[524288]{0}', space=vmem, size = 0x80000, scoped, tag = 'output window, operand 0']
    %8 = vsyncpa [#allocation3], 0
    %s9 = scalar_lea.sflag [#allocation3], 1
    %10 = vsyncpa %s9, 0
    %11 = vsyncpa [#allocation4], 0
    %s12 = scalar_lea.sflag [#allocation4], 1
    %13 = vsyncpa %s12, 0
    loop: start=0, step=1, limit=6
    $region2: #{tpu_custom_call.1} parent=1 // loop_pre_header
      _
    $region3: #{tpu_custom_call.1} parent=1 // loop_header
      %s15 = sphi 0, %s19
      %p16 = scmp.ge.s32.totalorder %s15, 6
      %s25 = sphi 0, %s27
      %s28 = sphi 0, %s25
      %s29 = sphi 0, %s28
      %s45 = sphi 0, %s29
      %s51 = sphi 0, %s53
      %s54 = sphi 0, %s51
      %s55 = sphi 0, %s54
      %s71 = sphi 0, %s55
      %s75 = sphi 0, %s75
      %s77 = sphi 0, %s75
      %s78 = sphi 0, %s77
      %s92 = sphi 0, %s78
      %s98 = sphi 0, %s100
      %s101 = sphi 0, %s98
      %s102 = sphi 0, %s101
      %s118 = sphi 0, %s102
    $region4: #{tpu_custom_call.1} parent=1 // loop_header_branch
      %18 = sbr.rel (%p16) target = $region8
    $region5: #{tpu_custom_call.1} parent=1 // loop_body
      %s20 = ssub.s32 %s15, 1
      %s21 = ssub.s32 %s15, 2
      %s22 = sadd.s32 %s15, 1
      %s23 = ssub.s32 %s15, %s22
      %p24 = scmp.eq.s32.totalorder %s23, 0
      %s26 = sadd.s32 %s25, 1
      %s27 = scalar_select %p24, %s25, %s26
      %p30 = pneg %p24
      %p31 = scmp.eq.s32.totalorder %s15, 3
      %p32 = por %p30, %p31
      %p33 = scmp.ne.s32.totalorder %s25, %s28
      %p34 = scmp.eq.s32.totalorder %s15, 0
      %p35 = por %p33, %p34
      %p36 = scmp.ne.s32.totalorder %s25, %s28
      %p37 = scmp.eq.s32.totalorder %s20, 3
      %p38 = por %p36, %p37
      %p39 = scmp.ne.s32.totalorder %s28, %s29
      %p40 = scmp.eq.s32.totalorder %s20, 0
      %p41 = por %p39, %p40
      %p42 = scmp.ne.s32.totalorder %s28, %s29
      %p43 = scmp.eq.s32.totalorder %s21, 3
      %p44 = por %p42, %p43
      %p46 = scmp.ne.s32.totalorder %s29, %s45
      %p47 = scmp.eq.s32.totalorder %s21, 0
      %p48 = por %p46, %p47
      %s49 = ssub.s32 %s15, %s22
      %p50 = scmp.eq.s32.totalorder %s49, 0
      %s52 = sadd.s32 %s51, 1
      %s53 = scalar_select %p50, %s51, %s52
      %p56 = pneg %p50
      %p57 = scmp.eq.s32.totalorder %s15, 3
      %p58 = por %p56, %p57
      %p59 = scmp.ne.s32.totalorder %s51, %s54
      %p60 = scmp.eq.s32.totalorder %s15, 0
      %p61 = por %p59, %p60
      %p62 = scmp.ne.s32.totalorder %s51, %s54
      %p63 = scmp.eq.s32.totalorder %s20, 3
      %p64 = por %p62, %p63
      %p65 = scmp.ne.s32.totalorder %s54, %s55
      %p66 = scmp.eq.s32.totalorder %s20, 0
      %p67 = por %p65, %p66
      %p68 = scmp.ne.s32.totalorder %s54, %s55
      %p69 = scmp.eq.s32.totalorder %s21, 3
      %p70 = por %p68, %p69
      %p72 = scmp.ne.s32.totalorder %s55, %s71
      %p73 = scmp.eq.s32.totalorder %s21, 0
      %p74 = por %p72, %p73
      %s76 = sadd.s32 %s75, 1
      %p79 = scmp.eq.s32.totalorder %s15, 3
      %p80 = scmp.ne.s32.totalorder %s75, %s77
      %p81 = scmp.eq.s32.totalorder %s15, 0
      %p82 = por %p80, %p81
      %p83 = scmp.ne.s32.totalorder %s75, %s77
      %p84 = scmp.eq.s32.totalorder %s20, 3
      %p85 = por %p83, %p84
      %p86 = scmp.ne.s32.totalorder %s77, %s78
      %p87 = scmp.eq.s32.totalorder %s20, 0
      %p88 = por %p86, %p87
      %p89 = scmp.ne.s32.totalorder %s77, %s78
      %p90 = scmp.eq.s32.totalorder %s21, 3
      %p91 = por %p89, %p90
      %p93 = scmp.ne.s32.totalorder %s78, %s92
      %p94 = scmp.eq.s32.totalorder %s21, 0
      %p95 = por %p93, %p94
      %s96 = ssub.s32 %s15, %s22
      %p97 = scmp.eq.s32.totalorder %s96, 0
      %s99 = sadd.s32 %s98, 1
      %s100 = scalar_select %p97, %s98, %s99
      %p103 = pneg %p97
      %p104 = scmp.eq.s32.totalorder %s15, 3
      %p105 = por %p103, %p104
      %p106 = scmp.ne.s32.totalorder %s98, %s101
      %p107 = scmp.eq.s32.totalorder %s15, 0
      %p108 = por %p106, %p107
      %p109 = scmp.ne.s32.totalorder %s98, %s101
      %p110 = scmp.eq.s32.totalorder %s20, 3
      %p111 = por %p109, %p110
      %p112 = scmp.ne.s32.totalorder %s101, %s102
      %p113 = scmp.eq.s32.totalorder %s20, 0
      %p114 = por %p112, %p113
      %p115 = scmp.ne.s32.totalorder %s101, %s102
      %p116 = scmp.eq.s32.totalorder %s21, 3
      %p117 = por %p115, %p116
      %p119 = scmp.ne.s32.totalorder %s102, %s118
      %p120 = scmp.eq.s32.totalorder %s21, 0
      %p121 = por %p119, %p120
      %p122 = scmp.le.s32.totalorder 1, %s15
      %p123 = scmp.lt.s32.totalorder %s15, 5
      %p124 = pnand %p122, %p123
      %p125 = pneg %p124
      // Predicated region
      $region9: #{tpu_custom_call.1} parent=5 // pred_check
        _
      $region10: #{tpu_custom_call.1} parent=5 // pred_check_branch
        %127 = sbr.rel (%p124) target = $region12
      $region11: #{tpu_custom_call.1} parent=5 // pred_region
        %s128 = ssub.s32 %s15, 1
        // Predicated region
        $region13: #{tpu_custom_call.1} parent=11 // pred_check
          %p129 = pneg %p88
        $region14: #{tpu_custom_call.1} parent=11 // pred_check_branch
          %131 = sbr.rel (%p129) target = $region16
        $region15: #{tpu_custom_call.1} parent=11 // pred_region
          _
        $region16: #{tpu_custom_call.1} parent=11 // pred_fallthru
          _
      $region12: #{tpu_custom_call.1} parent=5 // pred_fallthru
        _
      %p132 = scmp.lt.s32.totalorder %s15, 4
      // Predicated region
      $region17: #{tpu_custom_call.1} parent=5 // pred_check
        %p133 = pneg %p132
      $region18: #{tpu_custom_call.1} parent=5 // pred_check_branch
        %135 = sbr.rel (%p133) target = $region20
      $region19: #{tpu_custom_call.1} parent=5 // pred_region
        // Predicated region
        $region21: #{tpu_custom_call.1} parent=19 // pred_check
          %p136 = pneg %p35
        $region22: #{tpu_custom_call.1} parent=19 // pred_check_branch
          %138 = sbr.rel (%p136) target = $region24
        $region23: #{tpu_custom_call.1} parent=19 // pred_region
          %s139 = sand.u32 %s25, 1
          %s140 = scalar_lea.sflag [#allocation3], %s139
          %s141 = sand.u32 %s25, 1
          %s142 = smul.addr %s141, 512
          %s143 = scalar_lea.vmem [#allocation2], %s142
          %s144 = smul.u32 32, %s15
          %s145 = ssub.s32 125, %s144
          %p146 = scmp.lt.s32.totalorder %s145, 32
          %s147 = scalar_select %p146, %s145, 32
          %s148 = smul.u32 128, %s147
          %s149 = smul.u32 %s148, 2
          %s151 = ssub.s32 8192, %s149
          %152 = vsyncadd %s140, %s151
          %p153 = scmp.ne.s32.totalorder 0, %s149
          %s154 = smul.addr %s144, 2
          %s155 = smul.addr %s154, 128
          %s156 = scalar_lea.hbm %s0, %s155
          %s157 = smul.u32 16, %s147
          %s158 = sshll.u32 %s143, 4
          %s159 = int_to_ptr.vmem [resolvable:$true] %s158
          %s160 = sshll.u32 %s157, 4
          %164 = dma.hbm_to_vmem [thread:$0]  (%p153), %s156, %s160, %s159, %s140, 256, 256, 16
        $region24: #{tpu_custom_call.1} parent=19 // pred_fallthru
          _
        // Predicated region
        $region25: #{tpu_custom_call.1} parent=19 // pred_check
          %p165 = pneg %p61
        $region26: #{tpu_custom_call.1} parent=19 // pred_check_branch
          %167 = sbr.rel (%p165) target = $region28
        $region27: #{tpu_custom_call.1} parent=19 // pred_region
          %s168 = smul.u32 32, %s15
          %s169 = ssub.s32 125, %s168
          %p170 = scmp.lt.s32.totalorder %s169, 32
          %s171 = scalar_select %p170, %s169, 32
          %s172 = smul.u32 128, %s171
          %p173 = scmp.lt.s32.totalorder %s168, 124
          %s174 = scalar_select %p173, %s168, 124
          %s175 = smul.addr %s174, 8
          %s176 = scalar_lea.vmem %s1, %s175
          %s177 = smul.u32 32, %s15
          %s178 = ssub.s32 125, %s177
          %p179 = scmp.lt.s32.totalorder %s178, 32
          %s180 = scalar_select %p179, %s178, 32
          %s181 = smul.u32 128, %s180
        $region28: #{tpu_custom_call.1} parent=19 // pred_fallthru
          _
      $region20: #{tpu_custom_call.1} parent=5 // pred_fallthru
        _
      %p182 = scmp.le.s32.totalorder 1, %s15
      %p183 = scmp.lt.s32.totalorder %s15, 5
      %p184 = pnand %p182, %p183
      %p185 = pneg %p184
      // Predicated region
      $region29: #{tpu_custom_call.1} parent=5 // pred_check
        _
      $region30: #{tpu_custom_call.1} parent=5 // pred_check_branch
        %187 = sbr.rel (%p184) target = $region32
      $region31: #{tpu_custom_call.1} parent=5 // pred_region
        %s188 = ssub.s32 %s15, 1
        %s189 = sand.u32 %s28, 1
        %s190 = scalar_lea.sflag [#allocation3], %s189
        %s191 = sand.u32 %s28, 1
        %s192 = smul.addr %s191, 512
        %s193 = scalar_lea.vmem [#allocation2], %s192
        // Predicated region
        $region33: #{tpu_custom_call.1} parent=31 // pred_check
          %p194 = pneg %p41
        $region34: #{tpu_custom_call.1} parent=31 // pred_check_branch
          %196 = sbr.rel (%p194) target = $region36
        $region35: #{tpu_custom_call.1} parent=31 // pred_region
          %197 = dma.done %s190, 8192
        $region36: #{tpu_custom_call.1} parent=31 // pred_fallthru
          _
        %s198 = sand.u32 %s28, 1
        %s199 = scalar_lea.sflag [#allocation3], %s198
        %s200 = sand.u32 %s28, 1
        %s201 = smul.addr %s200, 512
        %s202 = scalar_lea.vmem [#allocation2], %s201
        %p203 = pneg %p41
        %p204 = pneg %p38
        %s205 = smul.u32 32, %s20
        %s206 = ssub.s32 125, %s205
        %p207 = scmp.lt.s32.totalorder %s206, 32
        %s208 = scalar_select %p207, %s206, 32
        %s209 = smul.u32 128, %s208
        %p210 = scmp.lt.s32.totalorder %s205, 124
        %s211 = scalar_select %p210, %s205, 124
        %s212 = smul.addr %s211, 8
        %s213 = scalar_lea.vmem %s1, %s212
        %p214 = pneg %p67
        %p215 = pneg %p64
        %p216 = pneg %p88
        %p217 = pneg %p85
        %p218 = pneg %p114
        %p219 = pneg %p111
        %s220 = sand.u32 %s101, 1
        %s221 = scalar_lea.sflag [#allocation4], %s220
        %s222 = sand.u32 %s101, 1
        %s223 = smul.addr %s222, 512
        %s224 = scalar_lea.vmem [#allocation5], %s223
        %s225 = smul.u32 32, %s20
        %s226 = ssub.s32 125, %s225
        %p227 = scmp.lt.s32.totalorder %s226, 32
        %s228 = scalar_select %p227, %s226, 32
        %s229 = smul.u32 128, %s228
        %s230 = smul.u32 %s229, 2
        %s231 = smul.u32 32, %s20
        %s232 = ssub.s32 125, %s231
        %p233 = scmp.lt.s32.totalorder %s232, 32
        %s234 = scalar_select %p233, %s232, 32
        %s235 = smul.u32 128, %s234
        %p236 = scmp.lt.s32.totalorder %s231, 124
        %s237 = scalar_select %p236, %s231, 124
        %s238 = smul.addr %s237, 8
        %s239 = scalar_lea.vmem %s1, %s238
        %s240 = smul.u32 32, %s20
        %s241 = ssub.s32 125, %s240
        %p242 = scmp.lt.s32.totalorder %s241, 32
        %s243 = scalar_select %p242, %s241, 32
        %s244 = smul.u32 128, %s243
        %s245 = smul.u32 32, %s20
        %s246 = ssub.s32 125, %s245
        %p247 = scmp.lt.s32.totalorder %s246, 32
        %s248 = scalar_select %p247, %s246, 32
        %s249 = smul.u32 128, %s248
        %s250 = smul.u32 %s249, 2
        %v251 = vld [vmem:[%s239] sm:$0xff]
        %v252 = vld [vmem:[%s239 + $0x8] sm:$0xff]
        %v253 = vld [vmem:[%s239 + $0x10] sm:$0xff]
        %v254 = vld [vmem:[%s239 + $0x18] sm:$0xff]
        %v255 = vld [vmem:[%s239 + $0x20] sm:$0xff]
        %v256 = vld [vmem:[%s239 + $0x28] sm:$0xff]
        %v257 = vld [vmem:[%s239 + $0x30] sm:$0xff]
        %v258 = vld [vmem:[%s239 + $0x38] sm:$0xff]
        %v259 = vld [vmem:[%s239 + $0x40] sm:$0xff]
        %v260 = vld [vmem:[%s239 + $0x48] sm:$0xff]
        %v261 = vld [vmem:[%s239 + $0x50] sm:$0xff]
        %v262 = vld [vmem:[%s239 + $0x58] sm:$0xff]
        %v263 = vld [vmem:[%s239 + $0x60] sm:$0xff]
        %v264 = vld [vmem:[%s239 + $0x68] sm:$0xff]
        %v265 = vld [vmem:[%s239 + $0x70] sm:$0xff]
        %v266 = vld [vmem:[%s239 + $0x78] sm:$0xff]
        %v267 = vld [vmem:[%s239 + $0x80] sm:$0xff]
        %v268 = vld [vmem:[%s239 + $0x88] sm:$0xff]
        %v269 = vld [vmem:[%s239 + $0x90] sm:$0xff]
        %v270 = vld [vmem:[%s239 + $0x98] sm:$0xff]
        %v271 = vld [vmem:[%s239 + $0xa0] sm:$0xff]
        %v272 = vld [vmem:[%s239 + $0xa8] sm:$0xff]
        %v273 = vld [vmem:[%s239 + $0xb0] sm:$0xff]
        %v274 = vld [vmem:[%s239 + $0xb8] sm:$0xff]
        %v275 = vld [vmem:[%s239 + $0xc0] sm:$0xff]
        %v276 = vld [vmem:[%s239 + $0xc8] sm:$0xff]
        %v277 = vld [vmem:[%s239 + $0xd0] sm:$0xff]
        %v278 = vld [vmem:[%s239 + $0xd8] sm:$0xff]
        %v279 = vld [vmem:[%s239 + $0xe0] sm:$0xff]
        %v280 = vld [vmem:[%s239 + $0xe8] sm:$0xff]
        %v281 = vld [vmem:[%s239 + $0xf0] sm:$0xff]
        %v282 = vld [vmem:[%s239 + $0xf8] sm:$0xff]
        %v283 = vld [vmem:[%s2] sm:$0xff]
        %v284 = vld [vmem:[%s2 + $0x8] sm:$0xff]
        %v285 = vld [vmem:[%s2 + $0x10] sm:$0xff]
        %v286 = vld [vmem:[%s2 + $0x18] sm:$0xff]
        %v287 = vld [vmem:[%s2 + $0x20] sm:$0xff]
        %v288 = vld [vmem:[%s2 + $0x28] sm:$0xff]
        %v289 = vld [vmem:[%s2 + $0x30] sm:$0xff]
        %v290 = vld [vmem:[%s2 + $0x38] sm:$0xff]
        %v291 = vld [vmem:[%s2 + $0x40] sm:$0xff]
        %v292 = vld [vmem:[%s2 + $0x48] sm:$0xff]
        %v293 = vld [vmem:[%s2 + $0x50] sm:$0xff]
        %v294 = vld [vmem:[%s2 + $0x58] sm:$0xff]
        %v295 = vld [vmem:[%s2 + $0x60] sm:$0xff]
        %v296 = vld [vmem:[%s2 + $0x68] sm:$0xff]
        %v297 = vld [vmem:[%s2 + $0x70] sm:$0xff]
        %v298 = vld [vmem:[%s2 + $0x78] sm:$0xff]
        %vm299 = vcmask 523264
        %v301 = vsel %vm299, %v251, 0
        %v304 = vsel %vm299, %v252, 0
        %v307 = vsel %vm299, %v253, 0
        %v310 = vsel %vm299, %v254, 0
        %v313 = vsel %vm299, %v255, 0
        %v316 = vsel %vm299, %v256, 0
        %v319 = vsel %vm299, %v257, 0
        %v322 = vsel %vm299, %v258, 0
        %v325 = vsel %vm299, %v259, 0
        %v328 = vsel %vm299, %v260, 0
        %v331 = vsel %vm299, %v261, 0
        %v334 = vsel %vm299, %v262, 0
        %v337 = vsel %vm299, %v263, 0
        %v340 = vsel %vm299, %v264, 0
        %v343 = vsel %vm299, %v265, 0
        %v346 = vsel %vm299, %v266, 0
        %v349 = vsel %vm299, %v267, 0
        %v352 = vsel %vm299, %v268, 0
        %v355 = vsel %vm299, %v269, 0
        %v358 = vsel %vm299, %v270, 0
        %v361 = vsel %vm299, %v271, 0
        %v364 = vsel %vm299, %v272, 0
        %v367 = vsel %vm299, %v273, 0
        %v370 = vsel %vm299, %v274, 0
        %v373 = vsel %vm299, %v275, 0
        %v376 = vsel %vm299, %v276, 0
        %v379 = vsel %vm299, %v277, 0
        %v382 = vsel %vm299, %v278, 0
        %v385 = vsel %vm299, %v279, 0
        %v388 = vsel %vm299, %v280, 0
        %v391 = vsel %vm299, %v281, 0
        %v394 = vsel %vm299, %v282, 0
        %396 = vmatprep.subr.mxu0 0.0
        %397 = vmatpush1.msra.mxu0 0.0
        %398 = vmatprep.subr.mxu0 0.0
        %399 = vmatpush1.msra.mxu0 0.0
        %400 = vmatprep.subr.mxu0 0.0
        %401 = vmatpush1.msra.mxu0 0.0
        %402 = vmatprep.subr.mxu0 0.0
        %403 = vmatpush1.msra.mxu0 0.0
        %404 = vmatprep.subr.mxu0 0.0
        %405 = vmatpush1.msra.mxu0 0.0
        %406 = vmatprep.subr.mxu0 0.0
        %407 = vmatpush1.msra.mxu0 0.0
        %408 = vmatprep.subr.mxu0 0.0
        %409 = vmatpush1.msra.mxu0 0.0
        %410 = vmatprep.subr.mxu0 0.0
        %411 = vmatpush1.msra.mxu0 0.0
        %412 = vmatprep.subr.mxu0 %v298
        %413 = vmatpush1.msra.mxu0 %v297
        %414 = vmatprep.subr.mxu0 %v296
        %415 = vmatpush1.msra.mxu0 %v295
        %416 = vmatprep.subr.mxu0 %v294
        %417 = vmatpush1.msra.mxu0 %v293
        %418 = vmatprep.subr.mxu0 %v292
        %419 = vmatpush1.msra.mxu0 %v291
        %420 = vmatprep.subr.mxu0 %v290
        %421 = vmatpush1.msra.mxu0 %v289
        %422 = vmatprep.subr.mxu0 %v288
        %423 = vmatpush1.msra.mxu0 %v287
        %424 = vmatprep.subr.mxu0 %v286
        %425 = vmatpush1.msra.mxu0 %v285
        %426 = vmatprep.subr.mxu0 %v284
        %427 = vmatpush1.msra.mxu0 %v283
        %428 = vmatprep.subr.mxu0 0.0
        %429 = vmatpush2.msra.mxu0 0.0
        %430 = vmatprep.subr.mxu0 0.0
        %431 = vmatpush2.msra.mxu0 0.0
        %432 = vmatprep.subr.mxu0 0.0
        %433 = vmatpush2.msra.mxu0 0.0
        %434 = vmatprep.subr.mxu0 0.0
        %435 = vmatpush2.msra.mxu0 0.0
        %436 = vmatprep.subr.mxu0 0.0
        %437 = vmatpush2.msra.mxu0 0.0
        %438 = vmatprep.subr.mxu0 0.0
        %439 = vmatpush2.msra.mxu0 0.0
        %440 = vmatprep.subr.mxu0 0.0
        %441 = vmatpush2.msra.mxu0 0.0
        %442 = vmatprep.subr.mxu0 0.0
        %443 = vmatpush2.msra.mxu0 0.0
        %444 = vmatprep.subr.mxu0 0.0
        %445 = vmatpush2.msra.mxu0 0.0
        %446 = vmatprep.subr.mxu0 0.0
        %447 = vmatpush2.msra.mxu0 0.0
        %448 = vmatprep.subr.mxu0 0.0
        %449 = vmatpush2.msra.mxu0 0.0
        %450 = vmatprep.subr.mxu0 0.0
        %451 = vmatpush2.msra.mxu0 0.0
        %452 = vmatprep.subr.mxu0 0.0
        %453 = vmatpush2.msra.mxu0 0.0
        %454 = vmatprep.subr.mxu0 0.0
        %455 = vmatpush2.msra.mxu0 0.0
        %456 = vmatprep.subr.mxu0 0.0
        %457 = vmatpush2.msra.mxu0 0.0
        %458 = vmatprep.subr.mxu0 0.0
        %459 = vmatpush2.msra.mxu0 0.0
        %460 = vmatprep.mubr.f32.mxu0 0.0
        %461 = vmatmul.mubr.f32.gmra.mxu0 %v301
        %v462 = vpop.f32.mrf.mxu0
        %v463 = vadd.f32 0.0, %v462
        %v464 = vpop.f32.mrf.mxu0
        %v465 = vadd.f32 0.0, %v464
        %466 = vmatprep.mubr.f32.mxu0 0.0
        %467 = vmatmul.mubr.f32.gmra.mxu0 %v304
        %v468 = vpop.f32.mrf.mxu0
        %v469 = vadd.f32 0.0, %v468
        %v470 = vpop.f32.mrf.mxu0
        %v471 = vadd.f32 0.0, %v470
        %472 = vmatprep.mubr.f32.mxu0 0.0
        %473 = vmatmul.mubr.f32.gmra.mxu0 %v307
        %v474 = vpop.f32.mrf.mxu0
        %v475 = vadd.f32 0.0, %v474
        %v476 = vpop.f32.mrf.mxu0
        %v477 = vadd.f32 0.0, %v476
        %478 = vmatprep.mubr.f32.mxu0 0.0
        %479 = vmatmul.mubr.f32.gmra.mxu0 %v310
        %v480 = vpop.f32.mrf.mxu0
        %v481 = vadd.f32 0.0, %v480
        %v482 = vpop.f32.mrf.mxu0
        %v483 = vadd.f32 0.0, %v482
        %484 = vmatprep.mubr.f32.mxu0 0.0
        %485 = vmatmul.mubr.f32.gmra.mxu0 %v313
        %v486 = vpop.f32.mrf.mxu0
        %v487 = vadd.f32 0.0, %v486
        %v488 = vpop.f32.mrf.mxu0
        %v489 = vadd.f32 0.0, %v488
        %490 = vmatprep.mubr.f32.mxu0 0.0
        %491 = vmatmul.mubr.f32.gmra.mxu0 %v316
        %v492 = vpop.f32.mrf.mxu0
        %v493 = vadd.f32 0.0, %v492
        %v494 = vpop.f32.mrf.mxu0
        %v495 = vadd.f32 0.0, %v494
        %496 = vmatprep.mubr.f32.mxu0 0.0
        %497 = vmatmul.mubr.f32.gmra.mxu0 %v319
        %v498 = vpop.f32.mrf.mxu0
        %v499 = vadd.f32 0.0, %v498
        %v500 = vpop.f32.mrf.mxu0
        %v501 = vadd.f32 0.0, %v500
        %502 = vmatprep.mubr.f32.mxu0 0.0
        %503 = vmatmul.mubr.f32.gmra.mxu0 %v322
        %v504 = vpop.f32.mrf.mxu0
        %v505 = vadd.f32 0.0, %v504
        %v506 = vpop.f32.mrf.mxu0
        %v507 = vadd.f32 0.0, %v506
        %508 = vmatprep.mubr.f32.mxu0 0.0
        %509 = vmatmul.mubr.f32.gmra.mxu0 %v325
        %v510 = vpop.f32.mrf.mxu0
        %v511 = vadd.f32 0.0, %v510
        %v512 = vpop.f32.mrf.mxu0
        %v513 = vadd.f32 0.0, %v512
        %514 = vmatprep.mubr.f32.mxu0 0.0
        %515 = vmatmul.mubr.f32.gmra.mxu0 %v328
        %v516 = vpop.f32.mrf.mxu0
        %v517 = vadd.f32 0.0, %v516
        %v518 = vpop.f32.mrf.mxu0
        %v519 = vadd.f32 0.0, %v518
        %520 = vmatprep.mubr.f32.mxu0 0.0
        %521 = vmatmul.mubr.f32.gmra.mxu0 %v331
        %v522 = vpop.f32.mrf.mxu0
        %v523 = vadd.f32 0.0, %v522
        %v524 = vpop.f32.mrf.mxu0
        %v525 = vadd.f32 0.0, %v524
        %526 = vmatprep.mubr.f32.mxu0 0.0
        %527 = vmatmul.mubr.f32.gmra.mxu0 %v334
        %v528 = vpop.f32.mrf.mxu0
        %v529 = vadd.f32 0.0, %v528
        %v530 = vpop.f32.mrf.mxu0
        %v531 = vadd.f32 0.0, %v530
        %532 = vmatprep.mubr.f32.mxu0 0.0
        %533 = vmatmul.mubr.f32.gmra.mxu0 %v337
        %v534 = vpop.f32.mrf.mxu0
        %v535 = vadd.f32 0.0, %v534
        %v536 = vpop.f32.mrf.mxu0
        %v537 = vadd.f32 0.0, %v536
        %538 = vmatprep.mubr.f32.mxu0 0.0
        %539 = vmatmul.mubr.f32.gmra.mxu0 %v340
        %v540 = vpop.f32.mrf.mxu0
        %v541 = vadd.f32 0.0, %v540
        %v542 = vpop.f32.mrf.mxu0
        %v543 = vadd.f32 0.0, %v542
        %544 = vmatprep.mubr.f32.mxu0 0.0
        %545 = vmatmul.mubr.f32.gmra.mxu0 %v343
        %v546 = vpop.f32.mrf.mxu0
        %v547 = vadd.f32 0.0, %v546
        %v548 = vpop.f32.mrf.mxu0
        %v549 = vadd.f32 0.0, %v548
        %550 = vmatprep.mubr.f32.mxu0 0.0
        %551 = vmatmul.mubr.f32.gmra.mxu0 %v346
        %v552 = vpop.f32.mrf.mxu0
        %v553 = vadd.f32 0.0, %v552
        %v554 = vpop.f32.mrf.mxu0
        %v555 = vadd.f32 0.0, %v554
        %556 = vmatprep.mubr.f32.mxu0 0.0
        %557 = vmatmul.mubr.f32.gmra.mxu0 %v349
        %v558 = vpop.f32.mrf.mxu0
        %v559 = vadd.f32 0.0, %v558
        %v560 = vpop.f32.mrf.mxu0
        %v561 = vadd.f32 0.0, %v560
        %562 = vmatprep.mubr.f32.mxu0 0.0
        %563 = vmatmul.mubr.f32.gmra.mxu0 %v352
        %v564 = vpop.f32.mrf.mxu0
        %v565 = vadd.f32 0.0, %v564
        %v566 = vpop.f32.mrf.mxu0
        %v567 = vadd.f32 0.0, %v566
        %568 = vmatprep.mubr.f32.mxu0 0.0
        %569 = vmatmul.mubr.f32.gmra.mxu0 %v355
        %v570 = vpop.f32.mrf.mxu0
        %v571 = vadd.f32 0.0, %v570
        %v572 = vpop.f32.mrf.mxu0
        %v573 = vadd.f32 0.0, %v572
        %574 = vmatprep.mubr.f32.mxu0 0.0
        %575 = vmatmul.mubr.f32.gmra.mxu0 %v358
        %v576 = vpop.f32.mrf.mxu0
        %v577 = vadd.f32 0.0, %v576
        %v578 = vpop.f32.mrf.mxu0
        %v579 = vadd.f32 0.0, %v578
        %580 = vmatprep.mubr.f32.mxu0 0.0
        %581 = vmatmul.mubr.f32.gmra.mxu0 %v361
        %v582 = vpop.f32.mrf.mxu0
        %v583 = vadd.f32 0.0, %v582
        %v584 = vpop.f32.mrf.mxu0
        %v585 = vadd.f32 0.0, %v584
        %586 = vmatprep.mubr.f32.mxu0 0.0
        %587 = vmatmul.mubr.f32.gmra.mxu0 %v364
        %v588 = vpop.f32.mrf.mxu0
        %v589 = vadd.f32 0.0, %v588
        %v590 = vpop.f32.mrf.mxu0
        %v591 = vadd.f32 0.0, %v590
        %592 = vmatprep.mubr.f32.mxu0 0.0
        %593 = vmatmul.mubr.f32.gmra.mxu0 %v367
        %v594 = vpop.f32.mrf.mxu0
        %v595 = vadd.f32 0.0, %v594
        %v596 = vpop.f32.mrf.mxu0
        %v597 = vadd.f32 0.0, %v596
        %598 = vmatprep.mubr.f32.mxu0 0.0
        %599 = vmatmul.mubr.f32.gmra.mxu0 %v370
        %v600 = vpop.f32.mrf.mxu0
        %v601 = vadd.f32 0.0, %v600
        %v602 = vpop.f32.mrf.mxu0
        %v603 = vadd.f32 0.0, %v602
        %604 = vmatprep.mubr.f32.mxu0 0.0
        %605 = vmatmul.mubr.f32.gmra.mxu0 %v373
        %v606 = vpop.f32.mrf.mxu0
        %v607 = vadd.f32 0.0, %v606
        %v608 = vpop.f32.mrf.mxu0
        %v609 = vadd.f32 0.0, %v608
        %610 = vmatprep.mubr.f32.mxu0 0.0
        %611 = vmatmul.mubr.f32.gmra.mxu0 %v376
        %v612 = vpop.f32.mrf.mxu0
        %v613 = vadd.f32 0.0, %v612
        %v614 = vpop.f32.mrf.mxu0
        %v615 = vadd.f32 0.0, %v614
        %616 = vmatprep.mubr.f32.mxu0 0.0
        %617 = vmatmul.mubr.f32.gmra.mxu0 %v379
        %v618 = vpop.f32.mrf.mxu0
        %v619 = vadd.f32 0.0, %v618
        %v620 = vpop.f32.mrf.mxu0
        %v621 = vadd.f32 0.0, %v620
        %622 = vmatprep.mubr.f32.mxu0 0.0
        %623 = vmatmul.mubr.f32.gmra.mxu0 %v382
        %v624 = vpop.f32.mrf.mxu0
        %v625 = vadd.f32 0.0, %v624
        %v626 = vpop.f32.mrf.mxu0
        %v627 = vadd.f32 0.0, %v626
        %628 = vmatprep.mubr.f32.mxu0 0.0
        %629 = vmatmul.mubr.f32.gmra.mxu0 %v385
        %v630 = vpop.f32.mrf.mxu0
        %v631 = vadd.f32 0.0, %v630
        %v632 = vpop.f32.mrf.mxu0
        %v633 = vadd.f32 0.0, %v632
        %634 = vmatprep.mubr.f32.mxu0 0.0
        %635 = vmatmul.mubr.f32.gmra.mxu0 %v388
        %v636 = vpop.f32.mrf.mxu0
        %v637 = vadd.f32 0.0, %v636
        %v638 = vpop.f32.mrf.mxu0
        %v639 = vadd.f32 0.0, %v638
        %640 = vmatprep.mubr.f32.mxu0 0.0
        %641 = vmatmul.mubr.f32.gmra.mxu0 %v391
        %v642 = vpop.f32.mrf.mxu0
        %v643 = vadd.f32 0.0, %v642
        %v644 = vpop.f32.mrf.mxu0
        %v645 = vadd.f32 0.0, %v644
        %646 = vmatprep.mubr.f32.mxu0 0.0
        %647 = vmatmul.mubr.f32.gmra.mxu0 %v394
        %v648 = vpop.f32.mrf.mxu0
        %v649 = vadd.f32 0.0, %v648
        %v650 = vpop.f32.mrf.mxu0
        %v651 = vadd.f32 0.0, %v650
        %652 = vdwg.mxu0
        %v653 = vld [vmem:[%s193] sm:$0xff]
        %v654 = vld [vmem:[%s193 + $0x8] sm:$0xff]
        %v655 = vld [vmem:[%s193 + $0x10] sm:$0xff]
        %v656 = vld [vmem:[%s193 + $0x18] sm:$0xff]
        %v657 = vld [vmem:[%s193 + $0x20] sm:$0xff]
        %v658 = vld [vmem:[%s193 + $0x28] sm:$0xff]
        %v659 = vld [vmem:[%s193 + $0x30] sm:$0xff]
        %v660 = vld [vmem:[%s193 + $0x38] sm:$0xff]
        %v661 = vld [vmem:[%s193 + $0x40] sm:$0xff]
        %v662 = vld [vmem:[%s193 + $0x48] sm:$0xff]
        %v663 = vld [vmem:[%s193 + $0x50] sm:$0xff]
        %v664 = vld [vmem:[%s193 + $0x58] sm:$0xff]
        %v665 = vld [vmem:[%s193 + $0x60] sm:$0xff]
        %v666 = vld [vmem:[%s193 + $0x68] sm:$0xff]
        %v667 = vld [vmem:[%s193 + $0x70] sm:$0xff]
        %v668 = vld [vmem:[%s193 + $0x78] sm:$0xff]
        %v669 = vld [vmem:[%s193 + $0x80] sm:$0xff]
        %v670 = vld [vmem:[%s193 + $0x88] sm:$0xff]
        %v671 = vld [vmem:[%s193 + $0x90] sm:$0xff]
        %v672 = vld [vmem:[%s193 + $0x98] sm:$0xff]
        %v673 = vld [vmem:[%s193 + $0xa0] sm:$0xff]
        %v674 = vld [vmem:[%s193 + $0xa8] sm:$0xff]
        %v675 = vld [vmem:[%s193 + $0xb0] sm:$0xff]
        %v676 = vld [vmem:[%s193 + $0xb8] sm:$0xff]
        %v677 = vld [vmem:[%s193 + $0xc0] sm:$0xff]
        %v678 = vld [vmem:[%s193 + $0xc8] sm:$0xff]
        %v679 = vld [vmem:[%s193 + $0xd0] sm:$0xff]
        %v680 = vld [vmem:[%s193 + $0xd8] sm:$0xff]
        %v681 = vld [vmem:[%s193 + $0xe0] sm:$0xff]
        %v682 = vld [vmem:[%s193 + $0xe8] sm:$0xff]
        %v683 = vld [vmem:[%s193 + $0xf0] sm:$0xff]
        %v684 = vld [vmem:[%s193 + $0xf8] sm:$0xff]
        %v685 = vld [vmem:[%s193 + $0x100] sm:$0xff]
        %v686 = vld [vmem:[%s193 + $0x108] sm:$0xff]
        %v687 = vld [vmem:[%s193 + $0x110] sm:$0xff]
        %v688 = vld [vmem:[%s193 + $0x118] sm:$0xff]
        %v689 = vld [vmem:[%s193 + $0x120] sm:$0xff]
        %v690 = vld [vmem:[%s193 + $0x128] sm:$0xff]
        %v691 = vld [vmem:[%s193 + $0x130] sm:$0xff]
        %v692 = vld [vmem:[%s193 + $0x138] sm:$0xff]
        %v693 = vld [vmem:[%s193 + $0x140] sm:$0xff]
        %v694 = vld [vmem:[%s193 + $0x148] sm:$0xff]
        %v695 = vld [vmem:[%s193 + $0x150] sm:$0xff]
        %v696 = vld [vmem:[%s193 + $0x158] sm:$0xff]
        %v697 = vld [vmem:[%s193 + $0x160] sm:$0xff]
        %v698 = vld [vmem:[%s193 + $0x168] sm:$0xff]
        %v699 = vld [vmem:[%s193 + $0x170] sm:$0xff]
        %v700 = vld [vmem:[%s193 + $0x178] sm:$0xff]
        %v701 = vld [vmem:[%s193 + $0x180] sm:$0xff]
        %v702 = vld [vmem:[%s193 + $0x188] sm:$0xff]
        %v703 = vld [vmem:[%s193 + $0x190] sm:$0xff]
        %v704 = vld [vmem:[%s193 + $0x198] sm:$0xff]
        %v705 = vld [vmem:[%s193 + $0x1a0] sm:$0xff]
        %v706 = vld [vmem:[%s193 + $0x1a8] sm:$0xff]
        %v707 = vld [vmem:[%s193 + $0x1b0] sm:$0xff]
        %v708 = vld [vmem:[%s193 + $0x1b8] sm:$0xff]
        %v709 = vld [vmem:[%s193 + $0x1c0] sm:$0xff]
        %v710 = vld [vmem:[%s193 + $0x1c8] sm:$0xff]
        %v711 = vld [vmem:[%s193 + $0x1d0] sm:$0xff]
        %v712 = vld [vmem:[%s193 + $0x1d8] sm:$0xff]
        %v713 = vld [vmem:[%s193 + $0x1e0] sm:$0xff]
        %v714 = vld [vmem:[%s193 + $0x1e8] sm:$0xff]
        %v715 = vld [vmem:[%s193 + $0x1f0] sm:$0xff]
        %v716 = vld [vmem:[%s193 + $0x1f8] sm:$0xff]
        %v717 = vadd.f32 %v653, %v463
        %v718 = vadd.f32 %v654, %v465
        %v719 = vadd.f32 %v655, %v469
        %v720 = vadd.f32 %v656, %v471
        %v721 = vadd.f32 %v657, %v475
        %v722 = vadd.f32 %v658, %v477
        %v723 = vadd.f32 %v659, %v481
        %v724 = vadd.f32 %v660, %v483
        %v725 = vadd.f32 %v661, %v487
        %v726 = vadd.f32 %v662, %v489
        %v727 = vadd.f32 %v663, %v493
        %v728 = vadd.f32 %v664, %v495
        %v729 = vadd.f32 %v665, %v499
        %v730 = vadd.f32 %v666, %v501
        %v731 = vadd.f32 %v667, %v505
        %v732 = vadd.f32 %v668, %v507
        %v733 = vadd.f32 %v669, %v511
        %v734 = vadd.f32 %v670, %v513
        %v735 = vadd.f32 %v671, %v517
        %v736 = vadd.f32 %v672, %v519
        %v737 = vadd.f32 %v673, %v523
        %v738 = vadd.f32 %v674, %v525
        %v739 = vadd.f32 %v675, %v529
        %v740 = vadd.f32 %v676, %v531
        %v741 = vadd.f32 %v677, %v535
        %v742 = vadd.f32 %v678, %v537
        %v743 = vadd.f32 %v679, %v541
        %v744 = vadd.f32 %v680, %v543
        %v745 = vadd.f32 %v681, %v547
        %v746 = vadd.f32 %v682, %v549
        %v747 = vadd.f32 %v683, %v553
        %v748 = vadd.f32 %v684, %v555
        %v749 = vadd.f32 %v685, %v559
        %v750 = vadd.f32 %v686, %v561
        %v751 = vadd.f32 %v687, %v565
        %v752 = vadd.f32 %v688, %v567
        %v753 = vadd.f32 %v689, %v571
        %v754 = vadd.f32 %v690, %v573
        %v755 = vadd.f32 %v691, %v577
        %v756 = vadd.f32 %v692, %v579
        %v757 = vadd.f32 %v693, %v583
        %v758 = vadd.f32 %v694, %v585
        %v759 = vadd.f32 %v695, %v589
        %v760 = vadd.f32 %v696, %v591
        %v761 = vadd.f32 %v697, %v595
        %v762 = vadd.f32 %v698, %v597
        %v763 = vadd.f32 %v699, %v601
        %v764 = vadd.f32 %v700, %v603
        %v765 = vadd.f32 %v701, %v607
        %v766 = vadd.f32 %v702, %v609
        %v767 = vadd.f32 %v703, %v613
        %v768 = vadd.f32 %v704, %v615
        %v769 = vadd.f32 %v705, %v619
        %v770 = vadd.f32 %v706, %v621
        %v771 = vadd.f32 %v707, %v625
        %v772 = vadd.f32 %v708, %v627
        %v773 = vadd.f32 %v709, %v631
        %v774 = vadd.f32 %v710, %v633
        %v775 = vadd.f32 %v711, %v637
        %v776 = vadd.f32 %v712, %v639
        %v777 = vadd.f32 %v713, %v643
        %v778 = vadd.f32 %v714, %v645
        %v779 = vadd.f32 %v715, %v649
        %v780 = vadd.f32 %v716, %v651
        %vm781 = vcmp.gt.f32.partialorder %v717, 0.0
        %vm782 = vcmp.gt.f32.partialorder %v718, 0.0
        %vm783 = vcmp.gt.f32.partialorder %v719, 0.0
        %vm784 = vcmp.gt.f32.partialorder %v720, 0.0
        %vm785 = vcmp.gt.f32.partialorder %v721, 0.0
        %vm786 = vcmp.gt.f32.partialorder %v722, 0.0
        %vm787 = vcmp.gt.f32.partialorder %v723, 0.0
        %vm788 = vcmp.gt.f32.partialorder %v724, 0.0
        %vm789 = vcmp.gt.f32.partialorder %v725, 0.0
        %vm790 = vcmp.gt.f32.partialorder %v726, 0.0
        %vm791 = vcmp.gt.f32.partialorder %v727, 0.0
        %vm792 = vcmp.gt.f32.partialorder %v728, 0.0
        %vm793 = vcmp.gt.f32.partialorder %v729, 0.0
        %vm794 = vcmp.gt.f32.partialorder %v730, 0.0
        %vm795 = vcmp.gt.f32.partialorder %v731, 0.0
        %vm796 = vcmp.gt.f32.partialorder %v732, 0.0
        %vm797 = vcmp.gt.f32.partialorder %v733, 0.0
        %vm798 = vcmp.gt.f32.partialorder %v734, 0.0
        %vm799 = vcmp.gt.f32.partialorder %v735, 0.0
        %vm800 = vcmp.gt.f32.partialorder %v736, 0.0
        %vm801 = vcmp.gt.f32.partialorder %v737, 0.0
        %vm802 = vcmp.gt.f32.partialorder %v738, 0.0
        %vm803 = vcmp.gt.f32.partialorder %v739, 0.0
        %vm804 = vcmp.gt.f32.partialorder %v740, 0.0
        %vm805 = vcmp.gt.f32.partialorder %v741, 0.0
        %vm806 = vcmp.gt.f32.partialorder %v742, 0.0
        %vm807 = vcmp.gt.f32.partialorder %v743, 0.0
        %vm808 = vcmp.gt.f32.partialorder %v744, 0.0
        %vm809 = vcmp.gt.f32.partialorder %v745, 0.0
        %vm810 = vcmp.gt.f32.partialorder %v746, 0.0
        %vm811 = vcmp.gt.f32.partialorder %v747, 0.0
        %vm812 = vcmp.gt.f32.partialorder %v748, 0.0
        %vm813 = vcmp.gt.f32.partialorder %v749, 0.0
        %vm814 = vcmp.gt.f32.partialorder %v750, 0.0
        %vm815 = vcmp.gt.f32.partialorder %v751, 0.0
        %vm816 = vcmp.gt.f32.partialorder %v752, 0.0
        %vm817 = vcmp.gt.f32.partialorder %v753, 0.0
        %vm818 = vcmp.gt.f32.partialorder %v754, 0.0
        %vm819 = vcmp.gt.f32.partialorder %v755, 0.0
        %vm820 = vcmp.gt.f32.partialorder %v756, 0.0
        %vm821 = vcmp.gt.f32.partialorder %v757, 0.0
        %vm822 = vcmp.gt.f32.partialorder %v758, 0.0
        %vm823 = vcmp.gt.f32.partialorder %v759, 0.0
        %vm824 = vcmp.gt.f32.partialorder %v760, 0.0
        %vm825 = vcmp.gt.f32.partialorder %v761, 0.0
        %vm826 = vcmp.gt.f32.partialorder %v762, 0.0
        %vm827 = vcmp.gt.f32.partialorder %v763, 0.0
        %vm828 = vcmp.gt.f32.partialorder %v764, 0.0
        %vm829 = vcmp.gt.f32.partialorder %v765, 0.0
        %vm830 = vcmp.gt.f32.partialorder %v766, 0.0
        %vm831 = vcmp.gt.f32.partialorder %v767, 0.0
        %vm832 = vcmp.gt.f32.partialorder %v768, 0.0
        %vm833 = vcmp.gt.f32.partialorder %v769, 0.0
        %vm834 = vcmp.gt.f32.partialorder %v770, 0.0
        %vm835 = vcmp.gt.f32.partialorder %v771, 0.0
        %vm836 = vcmp.gt.f32.partialorder %v772, 0.0
        %vm837 = vcmp.gt.f32.partialorder %v773, 0.0
        %vm838 = vcmp.gt.f32.partialorder %v774, 0.0
        %vm839 = vcmp.gt.f32.partialorder %v775, 0.0
        %vm840 = vcmp.gt.f32.partialorder %v776, 0.0
        %vm841 = vcmp.gt.f32.partialorder %v777, 0.0
        %vm842 = vcmp.gt.f32.partialorder %v778, 0.0
        %vm843 = vcmp.gt.f32.partialorder %v779, 0.0
        %vm844 = vcmp.gt.f32.partialorder %v780, 0.0
        %v845 = vmin.f32 %v717, 0.0
        %v846 = vmin.f32 %v718, 0.0
        %v847 = vmin.f32 %v719, 0.0
        %v848 = vmin.f32 %v720, 0.0
        %v849 = vmin.f32 %v721, 0.0
        %v850 = vmin.f32 %v722, 0.0
        %v851 = vmin.f32 %v723, 0.0
        %v852 = vmin.f32 %v724, 0.0
        %v853 = vmin.f32 %v725, 0.0
        %v854 = vmin.f32 %v726, 0.0
        %v855 = vmin.f32 %v727, 0.0
        %v856 = vmin.f32 %v728, 0.0
        %v857 = vmin.f32 %v729, 0.0
        %v858 = vmin.f32 %v730, 0.0
        %v859 = vmin.f32 %v731, 0.0
        %v860 = vmin.f32 %v732, 0.0
        %v861 = vmin.f32 %v733, 0.0
        %v862 = vmin.f32 %v734, 0.0
        %v863 = vmin.f32 %v735, 0.0
        %v864 = vmin.f32 %v736, 0.0
        %v865 = vmin.f32 %v737, 0.0
        %v866 = vmin.f32 %v738, 0.0
        %v867 = vmin.f32 %v739, 0.0
        %v868 = vmin.f32 %v740, 0.0
        %v869 = vmin.f32 %v741, 0.0
        %v870 = vmin.f32 %v742, 0.0
        %v871 = vmin.f32 %v743, 0.0
        %v872 = vmin.f32 %v744, 0.0
        %v873 = vmin.f32 %v745, 0.0
        %v874 = vmin.f32 %v746, 0.0
        %v875 = vmin.f32 %v747, 0.0
        %v876 = vmin.f32 %v748, 0.0
        %v877 = vmin.f32 %v749, 0.0
        %v878 = vmin.f32 %v750, 0.0
        %v879 = vmin.f32 %v751, 0.0
        %v880 = vmin.f32 %v752, 0.0
        %v881 = vmin.f32 %v753, 0.0
        %v882 = vmin.f32 %v754, 0.0
        %v883 = vmin.f32 %v755, 0.0
        %v884 = vmin.f32 %v756, 0.0
        %v885 = vmin.f32 %v757, 0.0
        %v886 = vmin.f32 %v758, 0.0
        %v887 = vmin.f32 %v759, 0.0
        %v888 = vmin.f32 %v760, 0.0
        %v889 = vmin.f32 %v761, 0.0
        %v890 = vmin.f32 %v762, 0.0
        %v891 = vmin.f32 %v763, 0.0
        %v892 = vmin.f32 %v764, 0.0
        %v893 = vmin.f32 %v765, 0.0
        %v894 = vmin.f32 %v766, 0.0
        %v895 = vmin.f32 %v767, 0.0
        %v896 = vmin.f32 %v768, 0.0
        %v897 = vmin.f32 %v769, 0.0
        %v898 = vmin.f32 %v770, 0.0
        %v899 = vmin.f32 %v771, 0.0
        %v900 = vmin.f32 %v772, 0.0
        %v901 = vmin.f32 %v773, 0.0
        %v902 = vmin.f32 %v774, 0.0
        %v903 = vmin.f32 %v775, 0.0
        %v904 = vmin.f32 %v776, 0.0
        %v905 = vmin.f32 %v777, 0.0
        %v906 = vmin.f32 %v778, 0.0
        %v907 = vmin.f32 %v779, 0.0
        %v908 = vmin.f32 %v780, 0.0
        %v909 = vmul.f32 %v845, 1.442695
        %v910 = vpow.pop %v909
        %v911 = vmul.f32 %v846, 1.442695
        %v912 = vpow.pop %v911
        %v913 = vmul.f32 %v847, 1.442695
        %v914 = vpow.pop %v913
        %v915 = vmul.f32 %v848, 1.442695
        %v916 = vpow.pop %v915
        %v917 = vmul.f32 %v849, 1.442695
        %v918 = vpow.pop %v917
        %v919 = vmul.f32 %v850, 1.442695
        %v920 = vpow.pop %v919
        %v921 = vmul.f32 %v851, 1.442695
        %v922 = vpow.pop %v921
        %v923 = vmul.f32 %v852, 1.442695
        %v924 = vpow.pop %v923
        %v925 = vmul.f32 %v853, 1.442695
        %v926 = vpow.pop %v925
        %v927 = vmul.f32 %v854, 1.442695
        %v928 = vpow.pop %v927
        %v929 = vmul.f32 %v855, 1.442695
        %v930 = vpow.pop %v929
        %v931 = vmul.f32 %v856, 1.442695
        %v932 = vpow.pop %v931
        %v933 = vmul.f32 %v857, 1.442695
        %v934 = vpow.pop %v933
        %v935 = vmul.f32 %v858, 1.442695
        %v936 = vpow.pop %v935
        %v937 = vmul.f32 %v859, 1.442695
        %v938 = vpow.pop %v937
        %v939 = vmul.f32 %v860, 1.442695
        %v940 = vpow.pop %v939
        %v941 = vmul.f32 %v861, 1.442695
        %v942 = vpow.pop %v941
        %v943 = vmul.f32 %v862, 1.442695
        %v944 = vpow.pop %v943
        %v945 = vmul.f32 %v863, 1.442695
        %v946 = vpow.pop %v945
        %v947 = vmul.f32 %v864, 1.442695
        %v948 = vpow.pop %v947
        %v949 = vmul.f32 %v865, 1.442695
        %v950 = vpow.pop %v949
        %v951 = vmul.f32 %v866, 1.442695
        %v952 = vpow.pop %v951
        %v953 = vmul.f32 %v867, 1.442695
        %v954 = vpow.pop %v953
        %v955 = vmul.f32 %v868, 1.442695
        %v956 = vpow.pop %v955
        %v957 = vmul.f32 %v869, 1.442695
        %v958 = vpow.pop %v957
        %v959 = vmul.f32 %v870, 1.442695
        %v960 = vpow.pop %v959
        %v961 = vmul.f32 %v871, 1.442695
        %v962 = vpow.pop %v961
        %v963 = vmul.f32 %v872, 1.442695
        %v964 = vpow.pop %v963
        %v965 = vmul.f32 %v873, 1.442695
        %v966 = vpow.pop %v965
        %v967 = vmul.f32 %v874, 1.442695
        %v968 = vpow.pop %v967
        %v969 = vmul.f32 %v875, 1.442695
        %v970 = vpow.pop %v969
        %v971 = vmul.f32 %v876, 1.442695
        %v972 = vpow.pop %v971
        %v973 = vmul.f32 %v877, 1.442695
        %v974 = vpow.pop %v973
        %v975 = vmul.f32 %v878, 1.442695
        %v976 = vpow.pop %v975
        %v977 = vmul.f32 %v879, 1.442695
        %v978 = vpow.pop %v977
        %v979 = vmul.f32 %v880, 1.442695
        %v980 = vpow.pop %v979
        %v981 = vmul.f32 %v881, 1.442695
        %v982 = vpow.pop %v981
        %v983 = vmul.f32 %v882, 1.442695
        %v984 = vpow.pop %v983
        %v985 = vmul.f32 %v883, 1.442695
        %v986 = vpow.pop %v985
        %v987 = vmul.f32 %v884, 1.442695
        %v988 = vpow.pop %v987
        %v989 = vmul.f32 %v885, 1.442695
        %v990 = vpow.pop %v989
        %v991 = vmul.f32 %v886, 1.442695
        %v992 = vpow.pop %v991
        %v993 = vmul.f32 %v887, 1.442695
        %v994 = vpow.pop %v993
        %v995 = vmul.f32 %v888, 1.442695
        %v996 = vpow.pop %v995
        %v997 = vmul.f32 %v889, 1.442695
        %v998 = vpow.pop %v997
        %v999 = vmul.f32 %v890, 1.442695
        %v1000 = vpow.pop %v999
        %v1001 = vmul.f32 %v891, 1.442695
        %v1002 = vpow.pop %v1001
        %v1003 = vmul.f32 %v892, 1.442695
        %v1004 = vpow.pop %v1003
        %v1005 = vmul.f32 %v893, 1.442695
        %v1006 = vpow.pop %v1005
        %v1007 = vmul.f32 %v894, 1.442695
        %v1008 = vpow.pop %v1007
        %v1009 = vmul.f32 %v895, 1.442695
        %v1010 = vpow.pop %v1009
        %v1011 = vmul.f32 %v896, 1.442695
        %v1012 = vpow.pop %v1011
        %v1013 = vmul.f32 %v897, 1.442695
        %v1014 = vpow.pop %v1013
        %v1015 = vmul.f32 %v898, 1.442695
        %v1016 = vpow.pop %v1015
        %v1017 = vmul.f32 %v899, 1.442695
        %v1018 = vpow.pop %v1017
        %v1019 = vmul.f32 %v900, 1.442695
        %v1020 = vpow.pop %v1019
        %v1021 = vmul.f32 %v901, 1.442695
        %v1022 = vpow.pop %v1021
        %v1023 = vmul.f32 %v902, 1.442695
        %v1024 = vpow.pop %v1023
        %v1025 = vmul.f32 %v903, 1.442695
        %v1026 = vpow.pop %v1025
        %v1027 = vmul.f32 %v904, 1.442695
        %v1028 = vpow.pop %v1027
        %v1029 = vmul.f32 %v905, 1.442695
        %v1030 = vpow.pop %v1029
        %v1031 = vmul.f32 %v906, 1.442695
        %v1032 = vpow.pop %v1031
        %v1033 = vmul.f32 %v907, 1.442695
        %v1034 = vpow.pop %v1033
        %v1035 = vmul.f32 %v908, 1.442695
        %v1036 = vpow.pop %v1035
        %v1037 = vsub.f32 %v910, 1.0
        %v1038 = vsub.f32 %v912, 1.0
        %v1039 = vsub.f32 %v914, 1.0
        %v1040 = vsub.f32 %v916, 1.0
        %v1041 = vsub.f32 %v918, 1.0
        %v1042 = vsub.f32 %v920, 1.0
        %v1043 = vsub.f32 %v922, 1.0
        %v1044 = vsub.f32 %v924, 1.0
        %v1045 = vsub.f32 %v926, 1.0
        %v1046 = vsub.f32 %v928, 1.0
        %v1047 = vsub.f32 %v930, 1.0
        %v1048 = vsub.f32 %v932, 1.0
        %v1049 = vsub.f32 %v934, 1.0
        %v1050 = vsub.f32 %v936, 1.0
        %v1051 = vsub.f32 %v938, 1.0
        %v1052 = vsub.f32 %v940, 1.0
        %v1053 = vsub.f32 %v942, 1.0
        %v1054 = vsub.f32 %v944, 1.0
        %v1055 = vsub.f32 %v946, 1.0
        %v1056 = vsub.f32 %v948, 1.0
        %v1057 = vsub.f32 %v950, 1.0
        %v1058 = vsub.f32 %v952, 1.0
        %v1059 = vsub.f32 %v954, 1.0
        %v1060 = vsub.f32 %v956, 1.0
        %v1061 = vsub.f32 %v958, 1.0
        %v1062 = vsub.f32 %v960, 1.0
        %v1063 = vsub.f32 %v962, 1.0
        %v1064 = vsub.f32 %v964, 1.0
        %v1065 = vsub.f32 %v966, 1.0
        %v1066 = vsub.f32 %v968, 1.0
        %v1067 = vsub.f32 %v970, 1.0
        %v1068 = vsub.f32 %v972, 1.0
        %v1069 = vsub.f32 %v974, 1.0
        %v1070 = vsub.f32 %v976, 1.0
        %v1071 = vsub.f32 %v978, 1.0
        %v1072 = vsub.f32 %v980, 1.0
        %v1073 = vsub.f32 %v982, 1.0
        %v1074 = vsub.f32 %v984, 1.0
        %v1075 = vsub.f32 %v986, 1.0
        %v1076 = vsub.f32 %v988, 1.0
        %v1077 = vsub.f32 %v990, 1.0
        %v1078 = vsub.f32 %v992, 1.0
        %v1079 = vsub.f32 %v994, 1.0
        %v1080 = vsub.f32 %v996, 1.0
        %v1081 = vsub.f32 %v998, 1.0
        %v1082 = vsub.f32 %v1000, 1.0
        %v1083 = vsub.f32 %v1002, 1.0
        %v1084 = vsub.f32 %v1004, 1.0
        %v1085 = vsub.f32 %v1006, 1.0
        %v1086 = vsub.f32 %v1008, 1.0
        %v1087 = vsub.f32 %v1010, 1.0
        %v1088 = vsub.f32 %v1012, 1.0
        %v1089 = vsub.f32 %v1014, 1.0
        %v1090 = vsub.f32 %v1016, 1.0
        %v1091 = vsub.f32 %v1018, 1.0
        %v1092 = vsub.f32 %v1020, 1.0
        %v1093 = vsub.f32 %v1022, 1.0
        %v1094 = vsub.f32 %v1024, 1.0
        %v1095 = vsub.f32 %v1026, 1.0
        %v1096 = vsub.f32 %v1028, 1.0
        %v1097 = vsub.f32 %v1030, 1.0
        %v1098 = vsub.f32 %v1032, 1.0
        %v1099 = vsub.f32 %v1034, 1.0
        %v1100 = vsub.f32 %v1036, 1.0
        %v1101 = vsel %vm781, %v717, %v1037
        %v1102 = vsel %vm782, %v718, %v1038
        %v1103 = vsel %vm783, %v719, %v1039
        %v1104 = vsel %vm784, %v720, %v1040
        %v1105 = vsel %vm785, %v721, %v1041
        %v1106 = vsel %vm786, %v722, %v1042
        %v1107 = vsel %vm787, %v723, %v1043
        %v1108 = vsel %vm788, %v724, %v1044
        %v1109 = vsel %vm789, %v725, %v1045
        %v1110 = vsel %vm790, %v726, %v1046
        %v1111 = vsel %vm791, %v727, %v1047
        %v1112 = vsel %vm792, %v728, %v1048
        %v1113 = vsel %vm793, %v729, %v1049
        %v1114 = vsel %vm794, %v730, %v1050
        %v1115 = vsel %vm795, %v731, %v1051
        %v1116 = vsel %vm796, %v732, %v1052
        %v1117 = vsel %vm797, %v733, %v1053
        %v1118 = vsel %vm798, %v734, %v1054
        %v1119 = vsel %vm799, %v735, %v1055
        %v1120 = vsel %vm800, %v736, %v1056
        %v1121 = vsel %vm801, %v737, %v1057
        %v1122 = vsel %vm802, %v738, %v1058
        %v1123 = vsel %vm803, %v739, %v1059
        %v1124 = vsel %vm804, %v740, %v1060
        %v1125 = vsel %vm805, %v741, %v1061
        %v1126 = vsel %vm806, %v742, %v1062
        %v1127 = vsel %vm807, %v743, %v1063
        %v1128 = vsel %vm808, %v744, %v1064
        %v1129 = vsel %vm809, %v745, %v1065
        %v1130 = vsel %vm810, %v746, %v1066
        %v1131 = vsel %vm811, %v747, %v1067
        %v1132 = vsel %vm812, %v748, %v1068
        %v1133 = vsel %vm813, %v749, %v1069
        %v1134 = vsel %vm814, %v750, %v1070
        %v1135 = vsel %vm815, %v751, %v1071
        %v1136 = vsel %vm816, %v752, %v1072
        %v1137 = vsel %vm817, %v753, %v1073
        %v1138 = vsel %vm818, %v754, %v1074
        %v1139 = vsel %vm819, %v755, %v1075
        %v1140 = vsel %vm820, %v756, %v1076
        %v1141 = vsel %vm821, %v757, %v1077
        %v1142 = vsel %vm822, %v758, %v1078
        %v1143 = vsel %vm823, %v759, %v1079
        %v1144 = vsel %vm824, %v760, %v1080
        %v1145 = vsel %vm825, %v761, %v1081
        %v1146 = vsel %vm826, %v762, %v1082
        %v1147 = vsel %vm827, %v763, %v1083
        %v1148 = vsel %vm828, %v764, %v1084
        %v1149 = vsel %vm829, %v765, %v1085
        %v1150 = vsel %vm830, %v766, %v1086
        %v1151 = vsel %vm831, %v767, %v1087
        %v1152 = vsel %vm832, %v768, %v1088
        %v1153 = vsel %vm833, %v769, %v1089
        %v1154 = vsel %vm834, %v770, %v1090
        %v1155 = vsel %vm835, %v771, %v1091
        %v1156 = vsel %vm836, %v772, %v1092
        %v1157 = vsel %vm837, %v773, %v1093
        %v1158 = vsel %vm838, %v774, %v1094
        %v1159 = vsel %vm839, %v775, %v1095
        %v1160 = vsel %vm840, %v776, %v1096
        %v1161 = vsel %vm841, %v777, %v1097
        %v1162 = vsel %vm842, %v778, %v1098
        %v1163 = vsel %vm843, %v779, %v1099
        %v1164 = vsel %vm844, %v780, %v1100
        %1165 = vst [vmem:[%s224] sm:$0xff] %v1101
        %1166 = vst [vmem:[%s224 + $0x8] sm:$0xff] %v1102
        %1167 = vst [vmem:[%s224 + $0x10] sm:$0xff] %v1103
        %1168 = vst [vmem:[%s224 + $0x18] sm:$0xff] %v1104
        %1169 = vst [vmem:[%s224 + $0x20] sm:$0xff] %v1105
        %1170 = vst [vmem:[%s224 + $0x28] sm:$0xff] %v1106
        %1171 = vst [vmem:[%s224 + $0x30] sm:$0xff] %v1107
        %1172 = vst [vmem:[%s224 + $0x38] sm:$0xff] %v1108
        %1173 = vst [vmem:[%s224 + $0x40] sm:$0xff] %v1109
        %1174 = vst [vmem:[%s224 + $0x48] sm:$0xff] %v1110
        %1175 = vst [vmem:[%s224 + $0x50] sm:$0xff] %v1111
        %1176 = vst [vmem:[%s224 + $0x58] sm:$0xff] %v1112
        %1177 = vst [vmem:[%s224 + $0x60] sm:$0xff] %v1113
        %1178 = vst [vmem:[%s224 + $0x68] sm:$0xff] %v1114
        %1179 = vst [vmem:[%s224 + $0x70] sm:$0xff] %v1115
        %1180 = vst [vmem:[%s224 + $0x78] sm:$0xff] %v1116
        %1181 = vst [vmem:[%s224 + $0x80] sm:$0xff] %v1117
        %1182 = vst [vmem:[%s224 + $0x88] sm:$0xff] %v1118
        %1183 = vst [vmem:[%s224 + $0x90] sm:$0xff] %v1119
        %1184 = vst [vmem:[%s224 + $0x98] sm:$0xff] %v1120
        %1185 = vst [vmem:[%s224 + $0xa0] sm:$0xff] %v1121
        %1186 = vst [vmem:[%s224 + $0xa8] sm:$0xff] %v1122
        %1187 = vst [vmem:[%s224 + $0xb0] sm:$0xff] %v1123
        %1188 = vst [vmem:[%s224 + $0xb8] sm:$0xff] %v1124
        %1189 = vst [vmem:[%s224 + $0xc0] sm:$0xff] %v1125
        %1190 = vst [vmem:[%s224 + $0xc8] sm:$0xff] %v1126
        %1191 = vst [vmem:[%s224 + $0xd0] sm:$0xff] %v1127
        %1192 = vst [vmem:[%s224 + $0xd8] sm:$0xff] %v1128
        %1193 = vst [vmem:[%s224 + $0xe0] sm:$0xff] %v1129
        %1194 = vst [vmem:[%s224 + $0xe8] sm:$0xff] %v1130
        %1195 = vst [vmem:[%s224 + $0xf0] sm:$0xff] %v1131
        %1196 = vst [vmem:[%s224 + $0xf8] sm:$0xff] %v1132
        %1197 = vst [vmem:[%s224 + $0x100] sm:$0xff] %v1133
        %1198 = vst [vmem:[%s224 + $0x108] sm:$0xff] %v1134
        %1199 = vst [vmem:[%s224 + $0x110] sm:$0xff] %v1135
        %1200 = vst [vmem:[%s224 + $0x118] sm:$0xff] %v1136
        %1201 = vst [vmem:[%s224 + $0x120] sm:$0xff] %v1137
        %1202 = vst [vmem:[%s224 + $0x128] sm:$0xff] %v1138
        %1203 = vst [vmem:[%s224 + $0x130] sm:$0xff] %v1139
        %1204 = vst [vmem:[%s224 + $0x138] sm:$0xff] %v1140
        %1205 = vst [vmem:[%s224 + $0x140] sm:$0xff] %v1141
        %1206 = vst [vmem:[%s224 + $0x148] sm:$0xff] %v1142
        %1207 = vst [vmem:[%s224 + $0x150] sm:$0xff] %v1143
        %1208 = vst [vmem:[%s224 + $0x158] sm:$0xff] %v1144
        %1209 = vst [vmem:[%s224 + $0x160] sm:$0xff] %v1145
        %1210 = vst [vmem:[%s224 + $0x168] sm:$0xff] %v1146
        %1211 = vst [vmem:[%s224 + $0x170] sm:$0xff] %v1147
        %1212 = vst [vmem:[%s224 + $0x178] sm:$0xff] %v1148
        %1213 = vst [vmem:[%s224 + $0x180] sm:$0xff] %v1149
        %1214 = vst [vmem:[%s224 + $0x188] sm:$0xff] %v1150
        %1215 = vst [vmem:[%s224 + $0x190] sm:$0xff] %v1151
        %1216 = vst [vmem:[%s224 + $0x198] sm:$0xff] %v1152
        %1217 = vst [vmem:[%s224 + $0x1a0] sm:$0xff] %v1153
        %1218 = vst [vmem:[%s224 + $0x1a8] sm:$0xff] %v1154
        %1219 = vst [vmem:[%s224 + $0x1b0] sm:$0xff] %v1155
        %1220 = vst [vmem:[%s224 + $0x1b8] sm:$0xff] %v1156
        %1221 = vst [vmem:[%s224 + $0x1c0] sm:$0xff] %v1157
        %1222 = vst [vmem:[%s224 + $0x1c8] sm:$0xff] %v1158
        %1223 = vst [vmem:[%s224 + $0x1d0] sm:$0xff] %v1159
        %1224 = vst [vmem:[%s224 + $0x1d8] sm:$0xff] %v1160
        %1225 = vst [vmem:[%s224 + $0x1e0] sm:$0xff] %v1161
        %1226 = vst [vmem:[%s224 + $0x1e8] sm:$0xff] %v1162
        %1227 = vst [vmem:[%s224 + $0x1f0] sm:$0xff] %v1163
        %1228 = vst [vmem:[%s224 + $0x1f8] sm:$0xff] %v1164
        %s1229 = sand.u32 %s101, 1
        %s1230 = scalar_lea.sflag [#allocation4], %s1229
        %s1231 = sand.u32 %s101, 1
        %s1232 = smul.addr %s1231, 512
        %s1233 = scalar_lea.vmem [#allocation5], %s1232
        // Predicated region
        $region37: #{tpu_custom_call.1} parent=31 // pred_check
          %p1234 = pneg %p111
        $region38: #{tpu_custom_call.1} parent=31 // pred_check_branch
          %1236 = sbr.rel (%p1234) target = $region40
        $region39: #{tpu_custom_call.1} parent=31 // pred_region
          %s1237 = smul.u32 32, %s20
          %s1238 = ssub.s32 125, %s1237
          %p1239 = scmp.lt.s32.totalorder %s1238, 32
          %s1240 = scalar_select %p1239, %s1238, 32
          %s1241 = smul.u32 128, %s1240
          %s1242 = smul.u32 %s1241, 2
          %s1244 = ssub.s32 8192, %s1242
          %1245 = vsyncadd %s1230, %s1244
          %p1246 = scmp.ne.s32.totalorder 0, %s1242
          %s1247 = smul.addr %s1237, 2
          %s1248 = smul.addr %s1247, 128
          %s1249 = scalar_lea.hbm %s3, %s1248
          %s1250 = smul.u32 16, %s1240
          %s1251 = sshll.u32 %s1233, 4
          %s1252 = int_to_ptr.vmem [resolvable:$true] %s1251
          %s1253 = sshll.u32 %s1250, 4
          %1257 = dma.vmem_to_hbm [thread:$0]  (%p1246), %s1252, %s1253, %s1249, %s1230, 256, 256, 16
        $region40: #{tpu_custom_call.1} parent=31 // pred_fallthru
          _
      $region32: #{tpu_custom_call.1} parent=5 // pred_fallthru
        _
      %p1258 = scmp.le.s32.totalorder 2, %s15
      // Predicated region
      $region41: #{tpu_custom_call.1} parent=5 // pred_check
        %p1259 = pneg %p1258
      $region42: #{tpu_custom_call.1} parent=5 // pred_check_branch
        %1261 = sbr.rel (%p1259) target = $region44
      $region43: #{tpu_custom_call.1} parent=5 // pred_region
        %s1262 = ssub.s32 %s15, 2
        // Predicated region
        $region45: #{tpu_custom_call.1} parent=43 // pred_check
          %p1263 = pneg %p117
        $region46: #{tpu_custom_call.1} parent=43 // pred_check_branch
          %1265 = sbr.rel (%p1263) target = $region48
        $region47: #{tpu_custom_call.1} parent=43 // pred_region
          %s1266 = sand.u32 %s102, 1
          %s1267 = scalar_lea.sflag [#allocation4], %s1266
          %s1268 = sand.u32 %s102, 1
          %s1269 = smul.addr %s1268, 512
          %s1270 = scalar_lea.vmem [#allocation5], %s1269
          %1271 = dma.done %s1267, 8192
        $region48: #{tpu_custom_call.1} parent=43 // pred_fallthru
          _
      $region44: #{tpu_custom_call.1} parent=5 // pred_fallthru
        _
    $region6: #{tpu_custom_call.1} parent=1 // loop_footer
      %s19 = sadd.s32 1, %s15
    $region7: #{tpu_custom_call.1} parent=1 // loop_footer_branch
      %14 = sbr.rel target = $region3
    $region8: #{tpu_custom_call.1} parent=1 // loop_exit
      _
    %1272 = vsyncpa [#allocation3], 1
    %s1273 = scalar_lea.sflag [#allocation3], 1
    %1274 = vsyncpa %s1273, 1
    %1275 = vsyncpa [#allocation4], 1
    %s1276 = scalar_lea.sflag [#allocation4], 1
    %1277 = vsyncpa %s1276, 1

</llo_original>
